<compile_context>
chip_gen: v7x
topology: tpu7x:2x2x1
jax: 0.10.0
libtpu: 0.0.40
codegen_flags: <defaults>
</compile_context>

<pallas_src>
import jax
import jax.numpy as jnp
from jax.experimental import pallas as pl
from jax.experimental.pallas import tpu as pltpu

_LANES = 128


def _round_up(v, m):
    return ((v + m - 1) // m) * m


def _round_down(v, m):
    return (v // m) * m


def _vmem_capacity_bytes():
    # Generation-aware VMEM capacity; conservative fallback is v7x's 64 MiB.
    try:
        cap = int(getattr(pltpu.get_tpu_info(), "vmem_capacity_bytes", 0))
        if cap > 0:
            return cap
    except Exception:
        pass
    return 64 * 1024 * 1024


def _select_tiles(B, C, s, x_itemsize, budget):
    """Pick (b_tile, c_tile, s_tile) so the double-buffered working set fits
    `budget` while blocks stay in the bandwidth-friendly >= ~1 MiB range."""
    c_mult = max(8, 32 // x_itemsize)            # sublane multiple for x's C axis

    def pipe_bytes(bt, ct, st):
        x_blk = bt * ct * st * x_itemsize        # one x (or out) block
        m_blk = bt * 32 * st                     # int8 mask block, sublane-padded
        return 2 * (2 * x_blk) + 2 * m_blk       # double-buffered in/out + mask

    # Spatial tile: largest 128-multiple <= s (full s when s < 128).  The
    # ragged tail (s % 128 != 0) becomes a partial block handled by Pallas.
    s_tile = s if s <= _LANES else _round_down(s, _LANES)
    c_tile = C
    b_tile = 1

    # Shrink the spatial tile until a single-batch, full-C block fits.
    while pipe_bytes(1, c_tile, s_tile) > budget and s_tile > _LANES:
        s_tile = max(_LANES, _round_down(s_tile // 2, _LANES))
    # Rebalance so all spatial blocks are roughly equal (avoids a tiny tail).
    if s > _LANES:
        n_s = pl.cdiv(s, s_tile)
        s_tile = min(s_tile, _round_up(pl.cdiv(s, n_s), _LANES))
    # Still too big (very large C): tile the channel axis too.
    if pipe_bytes(1, c_tile, s_tile) > budget and C > c_mult:
        c_tile = _round_down(C, c_mult)
        while pipe_bytes(1, c_tile, s_tile) > budget and c_tile > c_mult:
            c_tile = max(c_mult, _round_down(c_tile // 2, c_mult))
    # Fold batch elements into the block while it is tiny (per-grid-step
    # overhead ~0.35us dominates sub-MiB blocks).
    target_x_block = 1 << 20
    while (b_tile < B
           and b_tile * c_tile * s_tile * x_itemsize < target_x_block
           and pipe_bytes(min(2 * b_tile, B), c_tile, s_tile) <= budget):
        b_tile = min(2 * b_tile, B)

    # v7x has two TensorCores sharing HBM: expose >= 2 parallel grid steps for
    # non-tiny problems (harmless no-op on single-core v5e / v6e).
    steps = pl.cdiv(B, b_tile) * pl.cdiv(C, c_tile) * pl.cdiv(s, s_tile)
    if steps < 2 and b_tile * c_tile * s_tile * x_itemsize >= (512 << 10):
        if b_tile > 1:
            b_tile = (b_tile + 1) // 2
        elif s_tile > _LANES and s_tile % _LANES == 0:
            s_tile = max(_LANES, _round_up(s_tile // 2, _LANES))

    return b_tile, c_tile, s_tile, pipe_bytes(b_tile, c_tile, s_tile)


def _spatial_mask_kernel(x_ref, m_ref, o_ref):
    # x_ref: (B_T, C_T, S_T) activations; m_ref: (B_T, 1, S_T) int8 {0, 1}.
    # 0/1 is exact in every dtype, so the cast + broadcast multiply is exact.
    x = x_ref[...]
    o_ref[...] = x * m_ref[...].astype(x.dtype)


def random_spatial_mask_aug(x, key, mask_ratio, *, vmem_budget_bytes=None,
                            donate_x=False):
    """x: (B, C, H, W).  Returns x * random per-batch 0/1 spatial mask."""
    B, C, H, W = x.shape
    assert H == W, "RandomSpatialMaskAug requires square spatial dims"
    s = H * W
    # The PyTorch module uses Python round() here; match it exactly.
    len_keep = round(s * (1 - mask_ratio))

    # ---- random 0/1 mask (pure JAX) -------------------------------------
    # TODO(synk): per-row argsort/rank has no clean in-kernel TPU equivalent;
    # built here with a single argsort + scatter (equivalent to torch's
    # argsort(argsort(noise)) construction, but one sort instead of two).
    noise = jax.random.normal(key, (B, s), dtype=jnp.float32)
    ids_shuffle = jnp.argsort(noise, axis=1)                  # one sort
    keep_ids = ids_shuffle[:, :len_keep]                      # rank < len_keep
    mask = jnp.ones((B, s), jnp.int8)
    mask = mask.at[jnp.arange(B)[:, None], keep_ids].set(0)   # 0 -> zeroed
    mask3 = mask.reshape(B, 1, s)                             # broadcast over C

    # ---- x stays (B, C, s): no HBM pad / slice round-trips --------------
    x3 = x.reshape(B, C, s)
    x_itemsize = jnp.dtype(x.dtype).itemsize

    vmem_cap = _vmem_capacity_bytes()
    budget = vmem_budget_bytes
    if budget is None:
        budget = min((vmem_cap * 55) // 100, 56 * 1024 * 1024)
    budget = min(budget, (vmem_cap * 3) // 4)

    b_tile, c_tile, s_tile, pipe = _select_tiles(B, C, s, x_itemsize, budget)
    grid = (pl.cdiv(B, b_tile), pl.cdiv(s, s_tile), pl.cdiv(C, c_tile))

    # vmem limit derived from the actual working set, capped below capacity.
    vmem_limit = int(min((vmem_cap * 3) // 4,
                         max(pipe + (16 << 20), 32 << 20)))

    cost = pl.CostEstimate(
        flops=B * C * s,
        transcendentals=0,
        bytes_accessed=2 * B * C * s * x_itemsize + B * s,    # int8 mask
    )

    out3 = pl.pallas_call(
        _spatial_mask_kernel,
        out_shape=jax.ShapeDtypeStruct((B, C, s), x.dtype),
        grid=grid,
        in_specs=[
            # x block: b_tile batch elems, c_tile channels, s_tile pixels.
            pl.BlockSpec((b_tile, c_tile, s_tile), lambda b, si, c: (b, c, si)),
            # mask block: same batch/spatial window; index map ignores c, so
            # it stays resident across the (innermost) channel axis.
            pl.BlockSpec((b_tile, 1, s_tile), lambda b, si, c: (b, 0, si)),
        ],
        out_specs=pl.BlockSpec((b_tile, c_tile, s_tile),
                               lambda b, si, c: (b, c, si)),
        compiler_params=pltpu.CompilerParams(
            dimension_semantics=("parallel", "parallel", "parallel"),
            vmem_limit_bytes=vmem_limit,
        ),
        cost_estimate=cost,
        input_output_aliases=({0: 0} if donate_x else {}),
    )(x3, mask3)

    return out3.reshape(B, C, H, W)


def _reference(x, key, mask_ratio):
    """Pure-JAX replica of the PyTorch module, step by step."""
    B, C, H, W = x.shape
    s = H * W
    len_keep = round(s * (1 - mask_ratio))
    noise = jax.random.normal(key, (B, s), dtype=jnp.float32)
    ids_shuffle = jnp.argsort(noise, axis=1)
    ids_restore = jnp.argsort(ids_shuffle, axis=1)
    mask_sorted = jnp.ones((B, s), jnp.float32).at[:, :len_keep].set(0.0)
    mask = jnp.take_along_axis(mask_sorted, ids_restore, axis=1)
    mask = jnp.tile(mask, (1, C)).reshape(B, C, H, W)
    return x * mask.astype(x.dtype), len_keep


if __name__ == "__main__":
    root = jax.random.PRNGKey(0)

    cases = [
        # (B, C, H, W, mask_ratio); second case has s % 128 != 0 to exercise
        # the unpadded ragged-tail (partial block) path.
        (2, 4, 16, 16, 0.25),
        (3, 3, 12, 12, 0.5),
    ]
    for idx, (B, C, H, W, mask_ratio) in enumerate(cases):
        k_x, k_mask = jax.random.split(jax.random.fold_in(root, idx))
        x = jax.random.uniform(k_x, (B, C, H, W), dtype=jnp.float32,
                               minval=0.1, maxval=1.0)

        out = random_spatial_mask_aug(x, k_mask, mask_ratio)
        out = jax.block_until_ready(out)

        ref, len_keep = _reference(x, k_mask, mask_ratio)
        assert out.shape == (B, C, H, W)
        assert out.dtype == x.dtype
        assert bool(jnp.array_equal(out, ref))
        # exactly len_keep spatial positions zeroed per (batch, channel)
        zeros_per = jnp.sum(out[:, 0] == 0.0, axis=(1, 2))
        assert bool(jnp.all(zeros_per == len_keep))

    print("KERNEL_OK")
</pallas_src>

<mosaic_0001>
module attributes {stable_mosaic.version = 11 : i64} {
  func.func @_spatial_mask_kernel(%arg0: i32, %arg1: i32, %arg2: i32, %arg3: memref<2x4x256xf32, #tpu.memory_space<vmem>>, %arg4: memref<2x1x256xi8, #tpu.memory_space<vmem>>, %arg5: memref<2x4x256xf32, #tpu.memory_space<vmem>>) attributes {dimension_semantics = [#tpu.dimension_semantics<parallel>, #tpu.dimension_semantics<parallel>, #tpu.dimension_semantics<parallel>], iteration_bounds = array<i64: 1, 1, 1>, scalar_prefetch = 0 : i64, scratch_operands = 0 : i64, tpu.core_type = #tpu.core_type<tc>, window_params = [{transform_indices = @transform_0, window_bounds = array<i64: 2, 4, 256>}, {transform_indices = @transform_1, window_bounds = array<i64: 2, 1, 256>}, {transform_indices = @transform_2, window_bounds = array<i64: 2, 4, 256>}]} {
    %c0 = arith.constant 0 : index
    %c0_0 = arith.constant 0 : index
    %c0_1 = arith.constant 0 : index
    %0 = vector.load %arg3[%c0, %c0_0, %c0_1] : memref<2x4x256xf32, #tpu.memory_space<vmem>>, vector<2x4x256xf32>
    %c0_2 = arith.constant 0 : index
    %c0_3 = arith.constant 0 : index
    %c0_4 = arith.constant 0 : index
    %1 = vector.load %arg4[%c0_2, %c0_3, %c0_4] : memref<2x1x256xi8, #tpu.memory_space<vmem>>, vector<2x1x256xi8>
    %2 = arith.sitofp %1 : vector<2x1x256xi8> to vector<2x1x256xf32>
    %3 = vector.broadcast %2 : vector<2x1x256xf32> to vector<2x4x256xf32>
    %4 = arith.mulf %0, %3 : vector<2x4x256xf32>
    %c0_5 = arith.constant 0 : index
    %c0_6 = arith.constant 0 : index
    %c0_7 = arith.constant 0 : index
    %5 = vector.load %arg5[%c0_5, %c0_6, %c0_7] : memref<2x4x256xf32, #tpu.memory_space<vmem>>, vector<2x4x256xf32>
    tpu.vector_store %arg5[%c0_5, %c0_6, %c0_7], %4 {strides = array<i32>} : memref<2x4x256xf32, #tpu.memory_space<vmem>>, vector<2x4x256xf32>,
    return
  }
  func.func @transform_0(%arg0: i32, %arg1: i32, %arg2: i32) -> (i32, i32, i32) {
    %c0_i32 = arith.constant 0 : i32
    return %arg0, %arg2, %arg1 : i32, i32, i32
  }
  func.func @transform_1(%arg0: i32, %arg1: i32, %arg2: i32) -> (i32, i32, i32) {
    %c0_i32 = arith.constant 0 : i32
    %c0_i32_0 = arith.constant 0 : i32
    return %arg0, %c0_i32, %arg1 : i32, i32, i32
  }
  func.func @transform_2(%arg0: i32, %arg1: i32, %arg2: i32) -> (i32, i32, i32) {
    %c0_i32 = arith.constant 0 : i32
    return %arg0, %arg2, %arg1 : i32, i32, i32
  }
}

</mosaic_0001>

<llo_original>
// kernel: tpu_custom_call.1
$region0: #{tpu_custom_call.1}
  #allocation0 [shape = 'u32[]', space=smem, size = 0x4, offset = 0x4, fixed_abs, tag = 'smem constant byte address 0x4 - core index']
  #allocation1 [shape = 'u32[144,128]{1,0:T(1,128)}', space=vmem, size = 0x12000, scoped, tag = 'internal scratch']
  %s0 = inlined_call_operand.hbm [shape: f32[2,4,256], index: 0, kind: input, shape index: {}]
  %s1 = inlined_call_operand.vmem [shape: s8[2,1,256], index: 1, kind: input, shape index: {}]
  %s2 = inlined_call_operand.hbm [shape: f32[2,4,256], index: 2, kind: output, shape index: {}]
  %s3 = sld [smem:[#allocation0]]
  $region22: #{tpu_custom_call.1} parent=0
    _
  %s5 = ssub.s32 1, %s3
  %s6 = scalar_select 0, %s5, %s3
  $region1: #{tpu_custom_call.1} parent=0
    #allocation2 [shape = 'u8[8192]{0}', space=vmem, size = 0x2000, scoped, tag = 'input window, operand 0, single buffered']
    #allocation3 [shape = 's32[1]{0}', space=sflag, size = 0x4, scoped, tag = 'scoped memory for tpu_custom_call.1']
    #allocation4 [shape = 's32[1]{0}', space=sflag, size = 0x4, scoped, tag = 'scoped memory for tpu_custom_call.1']
    #allocation5 [shape = 'u8[8192]{0}', space=vmem, size = 0x2000, scoped, tag = 'output window, operand 0, single buffered']
    %7 = vsyncpa [#allocation3], 0
    %8 = vsyncpa [#allocation4], 0
    // Predicated region
    $region2: #{tpu_custom_call.1} parent=1 // pred_check
      _
    $region3: #{tpu_custom_call.1} parent=1 // pred_check_branch
      %10 = sbr.rel (0) target = $region5
    $region4: #{tpu_custom_call.1} parent=1 // pred_region
      %s12 = ssub.s32 256, 256
      %13 = vsyncadd [#allocation3], %s12
      %s14 = sshll.u32 [#allocation2], 4
      %s15 = int_to_ptr.vmem [resolvable:$true] %s14
      %20 = dma.hbm_to_vmem [thread:$0]  %s0, 256, %s15, [#allocation3], 128, 128, 8
    $region5: #{tpu_custom_call.1} parent=1 // pred_fallthru
      _
    // Predicated region
    $region6: #{tpu_custom_call.1} parent=1 // pred_check
      _
    $region7: #{tpu_custom_call.1} parent=1 // pred_check_branch
      %22 = sbr.rel (0) target = $region9
    $region8: #{tpu_custom_call.1} parent=1 // pred_region
      _
    $region9: #{tpu_custom_call.1} parent=1 // pred_fallthru
      _
    // Predicated region
    $region10: #{tpu_custom_call.1} parent=1 // pred_check
      _
    $region11: #{tpu_custom_call.1} parent=1 // pred_check_branch
      %24 = sbr.rel (0) target = $region13
    $region12: #{tpu_custom_call.1} parent=1 // pred_region
      %25 = dma.done [#allocation3], 256
    $region13: #{tpu_custom_call.1} parent=1 // pred_fallthru
      _
    %v26 = vld [vmem:[#allocation2] sm:$0xff]
    %v27 = vld [vmem:[#allocation2 + $0x8] sm:$0xff]
    %v28 = vld [vmem:[%s1] sm:$0x3]
    %v29 = vld [vmem:[%s1 + $0x2] sm:$0x3]
    %v30 = vunpack.c.0.s8 %v28
    %v31 = vunpack.c.0.s8 %v29
    %v32 = vcvt.s32.f32 %v30
    %v33 = vcvt.s32.f32 %v31
    %v36 = vlaneseq
    %v37 = vshrl.u32 %v36, 7
    %v38 = vsub.s32 0, %v37
    %v39 = vrot.slane %v32, %v38
    %v40 = vlaneseq
    %v41 = vshrl.u32 %v40, 7
    %v42 = vsub.s32 4, %v41
    %v43 = vrot.slane %v32, %v42
    %v44 = vlaneseq
    %v45 = vshrl.u32 %v44, 7
    %v46 = vsub.s32 0, %v45
    %v47 = vrot.slane %v33, %v46
    %v48 = vlaneseq
    %v49 = vshrl.u32 %v48, 7
    %v50 = vsub.s32 4, %v49
    %v51 = vrot.slane %v33, %v50
    %v56 = vlaneseq
    %v57 = vshrl.u32 %v56, 7
    %v58 = vsub.s32 0, %v57
    %v59 = vrot.slane %v39, %v58
    %v60 = vlaneseq
    %v61 = vshrl.u32 %v60, 7
    %v62 = vsub.s32 0, %v61
    %v63 = vrot.slane %v43, %v62
    %v64 = vlaneseq
    %v65 = vshrl.u32 %v64, 7
    %v66 = vsub.s32 0, %v65
    %v67 = vrot.slane %v47, %v66
    %v68 = vlaneseq
    %v69 = vshrl.u32 %v68, 7
    %v70 = vsub.s32 0, %v69
    %v71 = vrot.slane %v51, %v70
    %v76 = vcombine.low %v59, %v63
    %v77 = vcombine.low %v67, %v71
    %v80 = vmul.f32 %v26, %v76
    %v81 = vmul.f32 %v27, %v77
    %82 = vst [vmem:[#allocation5] sm:$0xff] %v80
    %83 = vst [vmem:[#allocation5 + $0x8] sm:$0xff] %v81
    // Predicated region
    $region14: #{tpu_custom_call.1} parent=1 // pred_check
      _
    $region15: #{tpu_custom_call.1} parent=1 // pred_check_branch
      %85 = sbr.rel (0) target = $region17
    $region16: #{tpu_custom_call.1} parent=1 // pred_region
      %s87 = ssub.s32 256, 256
      %88 = vsyncadd [#allocation4], %s87
      %s89 = sshll.u32 [#allocation5], 4
      %s90 = int_to_ptr.vmem [resolvable:$true] %s89
      %95 = dma.vmem_to_hbm [thread:$0]  %s90, 256, %s2, [#allocation4], 128, 128, 8
    $region17: #{tpu_custom_call.1} parent=1 // pred_fallthru
      _
    // Predicated region
    $region18: #{tpu_custom_call.1} parent=1 // pred_check
      _
    $region19: #{tpu_custom_call.1} parent=1 // pred_check_branch
      %97 = sbr.rel (0) target = $region21
    $region20: #{tpu_custom_call.1} parent=1 // pred_region
      %98 = dma.done [#allocation4], 256
    $region21: #{tpu_custom_call.1} parent=1 // pred_fallthru
      _
    %99 = vsyncpa [#allocation3], 1
    %100 = vsyncpa [#allocation4], 1

</llo_original>
